<compile_context>
chip_gen: v6e
topology: v6e:2x2x1
jax: 0.10.0
libtpu: 0.0.40
codegen_flags: <defaults>
</compile_context>

<pallas_src>
import functools
import math

import jax
import jax.numpy as jnp
from jax import lax
from jax.experimental import pallas as pl
from jax.experimental.pallas import tpu as pltpu

_MASK_VALUE = -1e30  # large finite negative; avoids inf-inf NaNs


def _flash_attn_kernel(q_ref, k_ref, v_ref, wo_ref, bias_ref, o_ref,
                       m_ref, l_ref, acc_ref, *,
                       inv_sqrt_dk: float, apply_mask: bool,
                       tq: int, tk: int, tq_total: int, tk_total: int):
    ki = pl.program_id(2)

    @pl.when(ki == 0)
    def _init():
        m_ref[...] = jnp.full_like(m_ref, _MASK_VALUE)
        l_ref[...] = jnp.zeros_like(l_ref)
        acc_ref[...] = jnp.zeros_like(acc_ref)

    # Fold the 1/sqrt(dk) scale into q (cheaper than scaling the Tq x Tk scores).
    q = q_ref[...] * inv_sqrt_dk                      # (tq, dk), input dtype
    k = k_ref[...]                                    # (tk, dk)

    # scores = q @ k^T without materializing a transpose: contract dim 1 of both.
    s = lax.dot_general(q, k, (((1,), (1,)), ((), ())),
                        preferred_element_type=jnp.float32)   # (tq, tk) f32

    if apply_mask:
        qi = pl.program_id(1)
        row = qi * tq + lax.broadcasted_iota(jnp.int32, s.shape, 0)
        col = ki * tk + lax.broadcasted_iota(jnp.int32, s.shape, 1)
        offset = tk_total - tq_total                  # causal, offset-aware
        s = jnp.where(col > row + offset, _MASK_VALUE, s)

    # Online softmax update.
    m_prev = m_ref[...]                               # (tq, 1)
    m_curr = jnp.max(s, axis=-1, keepdims=True)
    m_next = jnp.maximum(m_prev, m_curr)
    alpha = jnp.exp(m_prev - m_next)
    p = jnp.exp(s - m_next)                           # (tq, tk) f32

    l_ref[...] = alpha * l_ref[...] + jnp.sum(p, axis=-1, keepdims=True)
    acc_ref[...] = alpha * acc_ref[...] + jnp.dot(
        p.astype(v_ref.dtype), v_ref[...], preferred_element_type=jnp.float32)
    m_ref[...] = m_next

    @pl.when(ki == pl.num_programs(2) - 1)
    def _finalize():
        inv_l = pl.reciprocal(l_ref[...], approx=True)     # EUP, ~free
        ctx = acc_ref[...] * inv_l                         # (tq, dv)
        out = jnp.dot(ctx.astype(wo_ref.dtype), wo_ref[...],
                      preferred_element_type=jnp.float32) + bias_ref[...]
        o_ref[...] = out.astype(o_ref.dtype)


def _pick_tile(total: int, target: int, align: int = 8) -> int:
    """Largest multiple-of-`align` divisor of `total` that is <= target (else total)."""
    if total <= target:
        return total
    t = (min(target, total) // align) * align
    while t >= align:
        if total % t == 0:
            return t
        t -= align
    return total


def scaled_dot_attention(query, keys, values, wo_weight, wo_bias, *,
                         apply_mask: bool = False,
                         tq: int | None = None, tk: int | None = None):
    """query: (B,Tq,dk)  keys: (B,Tk,dk)  values: (B,Tk,dv)
       wo_weight: (model_dim, dv) torch-Linear layout, wo_bias: (model_dim,)"""
    # TODO(synk): apply_Wo=False (nn.Identity) branch of the module is not wired;
    # this kernel always applies the Wo projection (the module's default).
    B, Tq, dk = query.shape
    _, Tk, _ = keys.shape
    dv = values.shape[-1]
    model_dim = wo_weight.shape[0]

    # Tile sizes: 256/512 targets amortize per-step overhead and feed the
    # 2x256x256 MXU on v6e/v7x while staying well inside v7x's 64 MiB VMEM.
    tq = _pick_tile(Tq, 256 if tq is None else tq)
    tk = _pick_tile(Tk, 512 if tk is None else tk)
    n_q, n_k = Tq // tq, Tk // tk

    wo_t = wo_weight.T                       # (dv, model_dim) for right-multiply
    bias2d = wo_bias.reshape(1, model_dim)   # keep 2-D for TPU layout

    kernel = functools.partial(
        _flash_attn_kernel,
        inv_sqrt_dk=float(1.0 / math.sqrt(dk)),
        apply_mask=apply_mask,
        tq=tq, tk=tk, tq_total=Tq, tk_total=Tk,
    )

    return pl.pallas_call(
        kernel,
        out_shape=jax.ShapeDtypeStruct((B, Tq, model_dim), query.dtype),
        grid_spec=pltpu.PrefetchScalarGridSpec(
            num_scalar_prefetch=0,
            grid=(B, n_q, n_k),
            in_specs=[
                pl.BlockSpec((None, tq, dk), lambda b, qi, ki: (b, qi, 0)),
                pl.BlockSpec((None, tk, dk), lambda b, qi, ki: (b, ki, 0)),
                pl.BlockSpec((None, tk, dv), lambda b, qi, ki: (b, ki, 0)),
                pl.BlockSpec((dv, model_dim), lambda b, qi, ki: (0, 0)),
                pl.BlockSpec((1, model_dim), lambda b, qi, ki: (0, 0)),
            ],
            out_specs=pl.BlockSpec((None, tq, model_dim),
                                   lambda b, qi, ki: (b, qi, 0)),
            scratch_shapes=[
                pltpu.VMEM((tq, 1), jnp.float32),   # m (running max)
                pltpu.VMEM((tq, 1), jnp.float32),   # l (running denom)
                pltpu.VMEM((tq, dv), jnp.float32),  # acc (unnormalized PV)
            ]),
        compiler_params=pltpu.CompilerParams(
            dimension_semantics=("parallel", "parallel", "arbitrary"),
            vmem_limit_bytes=48 * 1024 * 1024),
    )(query, keys, values, wo_t, bias2d)


def _reference(query, keys, values, wo_weight, wo_bias, apply_mask):
    dk = query.shape[-1]
    scores = jnp.einsum("bqd,bkd->bqk", query, keys) / jnp.sqrt(jnp.float32(dk))
    if apply_mask:
        Tq, Tk = query.shape[1], keys.shape[1]
        row = jnp.arange(Tq)[:, None]
        col = jnp.arange(Tk)[None, :]
        mask = col > row + (Tk - Tq)
        scores = jnp.where(mask[None], -jnp.inf, scores)
    weights = jax.nn.softmax(scores, axis=-1)
    context = jnp.einsum("bqk,bkv->bqv", weights, values)
    return context @ wo_weight.T + wo_bias


def _make_inputs(key, B, Tq, Tk, dk, dv, model_dim):
    kq, kk, kv, kw, kb = jax.random.split(key, 5)
    query = jax.random.normal(kq, (B, Tq, dk), dtype=jnp.float32)
    keys = jax.random.normal(kk, (B, Tk, dk), dtype=jnp.float32)
    values = jax.random.normal(kv, (B, Tk, dv), dtype=jnp.float32)
    bound = 1.0 / math.sqrt(dv)
    wo_weight = jax.random.uniform(kw, (model_dim, dv), jnp.float32, -bound, bound)
    wo_bias = jax.random.uniform(kb, (model_dim,), jnp.float32, -bound, bound)
    return query, keys, values, wo_weight, wo_bias


if __name__ == "__main__":
    key = jax.random.PRNGKey(0)
    k_small, k_med = jax.random.split(key, 2)

    # 1) Small, module-consistent shapes (single tile per batch element).
    small = _make_inputs(k_small, B=2, Tq=8, Tk=8, dk=16, dv=16, model_dim=32)
    # 2) Medium shapes with explicit 128-tiles so the online-softmax /
    #    multi-tile path (grid = (B, 2, 2)) is exercised.
    med = _make_inputs(k_med, B=2, Tq=256, Tk=256, dk=64, dv=64, model_dim=128)

    cases = [
        ("small", small, dict()),
        ("medium", med, dict(tq=128, tk=128)),
    ]
    for name, (q, k, v, w, b), tiles in cases:
        for apply_mask in (False, True):
            out = scaled_dot_attention(q, k, v, w, b, apply_mask=apply_mask, **tiles)
            out = jax.block_until_ready(out)
            ref = _reference(q, k, v, w, b, apply_mask)
            assert jnp.allclose(out, ref, atol=2e-3, rtol=2e-3), \
                f"mismatch ({name}, apply_mask={apply_mask})"

    print("KERNEL_OK")
</pallas_src>

<mosaic_0001>
module attributes {stable_mosaic.version = 11 : i64} {
  func.func @_flash_attn_kernel(%arg0: i32, %arg1: i32, %arg2: i32, %arg3: memref<1x8x16xf32, #tpu.memory_space<vmem>>, %arg4: memref<1x8x16xf32, #tpu.memory_space<vmem>>, %arg5: memref<1x8x16xf32, #tpu.memory_space<vmem>>, %arg6: memref<16x32xf32, #tpu.memory_space<vmem>>, %arg7: memref<1x32xf32, #tpu.memory_space<vmem>>, %arg8: memref<1x8x32xf32, #tpu.memory_space<vmem>>, %arg9: memref<8x1xf32, #tpu.memory_space<vmem>>, %arg10: memref<8x1xf32, #tpu.memory_space<vmem>>, %arg11: memref<8x16xf32, #tpu.memory_space<vmem>>) attributes {dimension_semantics = [#tpu.dimension_semantics<parallel>, #tpu.dimension_semantics<parallel>, #tpu.dimension_semantics<arbitrary>], iteration_bounds = array<i64: 2, 1, 1>, scalar_prefetch = 0 : i64, scratch_operands = 3 : i64, tpu.core_type = #tpu.core_type<tc>, window_params = [{transform_indices = @transform_0, window_bounds = array<i64: 1, 8, 16>}, {transform_indices = @transform_1, window_bounds = array<i64: 1, 8, 16>}, {transform_indices = @transform_2, window_bounds = array<i64: 1, 8, 16>}, {pipeline_mode = #tpu.pipeline_mode<synchronous>, transform_indices = @transform_3, window_bounds = array<i64: 16, 32>}, {pipeline_mode = #tpu.pipeline_mode<synchronous>, transform_indices = @transform_4, window_bounds = array<i64: 1, 32>}, {transform_indices = @transform_5, window_bounds = array<i64: 1, 8, 32>}]} {
    %c0_i32 = arith.constant 0 : i32
    %0 = arith.cmpi eq, %arg2, %c0_i32 : i32
    %1 = arith.extui %0 : i1 to i32
    %c0_i32_0 = arith.constant 0 : i32
    %2 = arith.cmpi ne, %1, %c0_i32_0 : i32
    scf.if %2 {
      %cst_27 = arith.constant -1.000000e+30 : f32
      %37 = vector.broadcast %cst_27 : f32 to vector<8x1xf32>
      %c0_28 = arith.constant 0 : index
      %c0_29 = arith.constant 0 : index
      %38 = vector.load %arg9[%c0_28, %c0_29] : memref<8x1xf32, #tpu.memory_space<vmem>>, vector<8x1xf32>
      tpu.vector_store %arg9[%c0_28, %c0_29], %37 {strides = array<i32>} : memref<8x1xf32, #tpu.memory_space<vmem>>, vector<8x1xf32>,
      %cst_30 = arith.constant 0.000000e+00 : f32
      %39 = vector.broadcast %cst_30 : f32 to vector<8x1xf32>
      %c0_31 = arith.constant 0 : index
      %c0_32 = arith.constant 0 : index
      %40 = vector.load %arg10[%c0_31, %c0_32] : memref<8x1xf32, #tpu.memory_space<vmem>>, vector<8x1xf32>
      tpu.vector_store %arg10[%c0_31, %c0_32], %39 {strides = array<i32>} : memref<8x1xf32, #tpu.memory_space<vmem>>, vector<8x1xf32>,
      %cst_33 = arith.constant 0.000000e+00 : f32
      %41 = vector.broadcast %cst_33 : f32 to vector<8x16xf32>
      %c0_34 = arith.constant 0 : index
      %c0_35 = arith.constant 0 : index
      %42 = vector.load %arg11[%c0_34, %c0_35] : memref<8x16xf32, #tpu.memory_space<vmem>>, vector<8x16xf32>
      tpu.vector_store %arg11[%c0_34, %c0_35], %41 {strides = array<i32>} : memref<8x16xf32, #tpu.memory_space<vmem>>, vector<8x16xf32>,
    } else {
    }
    %c0 = arith.constant 0 : index
    %c0_1 = arith.constant 0 : index
    %c0_2 = arith.constant 0 : index
    %3 = vector.load %arg3[%c0, %c0_1, %c0_2] : memref<1x8x16xf32, #tpu.memory_space<vmem>>, vector<1x8x16xf32>
    %4 = vector.shape_cast %3 : vector<1x8x16xf32> to vector<8x16xf32>
    %cst = arith.constant 2.500000e-01 : f32
    %5 = vector.broadcast %cst : f32 to vector<8x16xf32>
    %6 = arith.mulf %4, %5 : vector<8x16xf32>
    %c0_3 = arith.constant 0 : index
    %c0_4 = arith.constant 0 : index
    %c0_5 = arith.constant 0 : index
    %7 = vector.load %arg4[%c0_3, %c0_4, %c0_5] : memref<1x8x16xf32, #tpu.memory_space<vmem>>, vector<1x8x16xf32>
    %8 = vector.shape_cast %7 : vector<1x8x16xf32> to vector<8x16xf32>
    %cst_6 = arith.constant dense<0.000000e+00> : vector<8x8xf32>
    %9 = tpu.matmul %6, %8, %cst_6 {dimension_numbers = #tpu.dot_dimension_numbers<[1], [1], [0], [0], [0, 0, 1, 0], [], []>} : vector<8x16xf32>, vector<8x16xf32>, vector<8x8xf32> -> vector<8x8xf32>
    %c0_7 = arith.constant 0 : index
    %c0_8 = arith.constant 0 : index
    %10 = vector.load %arg9[%c0_7, %c0_8] : memref<8x1xf32, #tpu.memory_space<vmem>>, vector<8x1xf32>
    %cst_9 = arith.constant dense<0xFF800000> : vector<8xf32>
    %11 = vector.multi_reduction <maximumf>, %9, %cst_9 [1] : vector<8x8xf32> to vector<8xf32>
    %12 = vector.shape_cast %11 : vector<8xf32> to vector<8x1xf32>
    %13 = arith.maximumf %10, %12 : vector<8x1xf32>
    %14 = arith.subf %10, %13 : vector<8x1xf32>
    %15 = math.exp %14 : vector<8x1xf32>
    %16 = vector.broadcast %13 : vector<8x1xf32> to vector<8x8xf32>
    %17 = arith.subf %9, %16 : vector<8x8xf32>
    %18 = math.exp %17 : vector<8x8xf32>
    %c0_10 = arith.constant 0 : index
    %c0_11 = arith.constant 0 : index
    %19 = vector.load %arg10[%c0_10, %c0_11] : memref<8x1xf32, #tpu.memory_space<vmem>>, vector<8x1xf32>
    %20 = arith.mulf %15, %19 : vector<8x1xf32>
    %cst_12 = arith.constant dense<0.000000e+00> : vector<8xf32>
    %21 = vector.multi_reduction <add>, %18, %cst_12 [1] : vector<8x8xf32> to vector<8xf32>
    %22 = vector.shape_cast %21 : vector<8xf32> to vector<8x1xf32>
    %23 = arith.addf %20, %22 : vector<8x1xf32>
    %c0_13 = arith.constant 0 : index
    %c0_14 = arith.constant 0 : index
    %24 = vector.load %arg10[%c0_13, %c0_14] : memref<8x1xf32, #tpu.memory_space<vmem>>, vector<8x1xf32>
    tpu.vector_store %arg10[%c0_13, %c0_14], %23 {strides = array<i32>} : memref<8x1xf32, #tpu.memory_space<vmem>>, vector<8x1xf32>,
    %c0_15 = arith.constant 0 : index
    %c0_16 = arith.constant 0 : index
    %25 = vector.load %arg11[%c0_15, %c0_16] : memref<8x16xf32, #tpu.memory_space<vmem>>, vector<8x16xf32>
    %26 = vector.broadcast %15 : vector<8x1xf32> to vector<8x16xf32>
    %27 = arith.mulf %26, %25 : vector<8x16xf32>
    %c0_17 = arith.constant 0 : index
    %c0_18 = arith.constant 0 : index
    %c0_19 = arith.constant 0 : index
    %28 = vector.load %arg5[%c0_17, %c0_18, %c0_19] : memref<1x8x16xf32, #tpu.memory_space<vmem>>, vector<1x8x16xf32>
    %29 = vector.shape_cast %28 : vector<1x8x16xf32> to vector<8x16xf32>
    %cst_20 = arith.constant dense<0.000000e+00> : vector<8x16xf32>
    %30 = tpu.matmul %18, %29, %cst_20 {dimension_numbers = #tpu.dot_dimension_numbers<[1], [0], [0], [1], [0, 0, 1, 1], [], []>} : vector<8x8xf32>, vector<8x16xf32>, vector<8x16xf32> -> vector<8x16xf32>
    %31 = arith.addf %27, %30 : vector<8x16xf32>
    %c0_21 = arith.constant 0 : index
    %c0_22 = arith.constant 0 : index
    %32 = vector.load %arg11[%c0_21, %c0_22] : memref<8x16xf32, #tpu.memory_space<vmem>>, vector<8x16xf32>
    tpu.vector_store %arg11[%c0_21, %c0_22], %31 {strides = array<i32>} : memref<8x16xf32, #tpu.memory_space<vmem>>, vector<8x16xf32>,
    %c0_23 = arith.constant 0 : index
    %c0_24 = arith.constant 0 : index
    %33 = vector.load %arg9[%c0_23, %c0_24] : memref<8x1xf32, #tpu.memory_space<vmem>>, vector<8x1xf32>
    tpu.vector_store %arg9[%c0_23, %c0_24], %13 {strides = array<i32>} : memref<8x1xf32, #tpu.memory_space<vmem>>, vector<8x1xf32>,
    %c0_i32_25 = arith.constant 0 : i32
    %34 = arith.cmpi eq, %arg2, %c0_i32_25 : i32
    %35 = arith.extui %34 : i1 to i32
    %c0_i32_26 = arith.constant 0 : i32
    %36 = arith.cmpi ne, %35, %c0_i32_26 : i32
    scf.if %36 {
      %c0_27 = arith.constant 0 : index
      %c0_28 = arith.constant 0 : index
      %37 = vector.load %arg10[%c0_27, %c0_28] : memref<8x1xf32, #tpu.memory_space<vmem>>, vector<8x1xf32>
      %38 = tpu.reciprocal %37 {approx = true} : vector<8x1xf32> -> vector<8x1xf32>
      %c0_29 = arith.constant 0 : index
      %c0_30 = arith.constant 0 : index
      %39 = vector.load %arg11[%c0_29, %c0_30] : memref<8x16xf32, #tpu.memory_space<vmem>>, vector<8x16xf32>
      %40 = vector.broadcast %38 : vector<8x1xf32> to vector<8x16xf32>
      %41 = arith.mulf %39, %40 : vector<8x16xf32>
      %c0_31 = arith.constant 0 : index
      %c0_32 = arith.constant 0 : index
      %42 = vector.load %arg6[%c0_31, %c0_32] : memref<16x32xf32, #tpu.memory_space<vmem>>, vector<16x32xf32>
      %cst_33 = arith.constant dense<0.000000e+00> : vector<8x32xf32>
      %43 = tpu.matmul %41, %42, %cst_33 {dimension_numbers = #tpu.dot_dimension_numbers<[1], [0], [0], [1], [0, 0, 1, 1], [], []>} : vector<8x16xf32>, vector<16x32xf32>, vector<8x32xf32> -> vector<8x32xf32>
      %c0_34 = arith.constant 0 : index
      %c0_35 = arith.constant 0 : index
      %44 = vector.load %arg7[%c0_34, %c0_35] : memref<1x32xf32, #tpu.memory_space<vmem>>, vector<1x32xf32>
      %45 = vector.broadcast %44 : vector<1x32xf32> to vector<8x32xf32>
      %46 = arith.addf %43, %45 : vector<8x32xf32>
      %c0_36 = arith.constant 0 : index
      %c0_37 = arith.constant 0 : index
      %c0_38 = arith.constant 0 : index
      %47 = vector.load %arg8[%c0_36, %c0_37, %c0_38] : memref<1x8x32xf32, #tpu.memory_space<vmem>>, vector<1x8x32xf32>
      %48 = vector.shape_cast %47 : vector<1x8x32xf32> to vector<8x32xf32>
      %49 = vector.shape_cast %46 : vector<8x32xf32> to vector<1x8x32xf32>
      tpu.vector_store %arg8[%c0_36, %c0_37, %c0_38], %49 {strides = array<i32>} : memref<1x8x32xf32, #tpu.memory_space<vmem>>, vector<1x8x32xf32>,
    } else {
    }
    return
  }
  func.func @transform_0(%arg0: i32, %arg1: i32, %arg2: i32) -> (i32, i32, i32) {
    %c0_i32 = arith.constant 0 : i32
    %c0_i32_0 = arith.constant 0 : i32
    return %arg0, %arg1, %c0_i32 : i32, i32, i32
  }
  func.func @transform_1(%arg0: i32, %arg1: i32, %arg2: i32) -> (i32, i32, i32) {
    %c0_i32 = arith.constant 0 : i32
    %c0_i32_0 = arith.constant 0 : i32
    return %arg0, %arg2, %c0_i32 : i32, i32, i32
  }
  func.func @transform_2(%arg0: i32, %arg1: i32, %arg2: i32) -> (i32, i32, i32) {
    %c0_i32 = arith.constant 0 : i32
    %c0_i32_0 = arith.constant 0 : i32
    return %arg0, %arg2, %c0_i32 : i32, i32, i32
  }
  func.func @transform_3(%arg0: i32, %arg1: i32, %arg2: i32) -> (i32, i32) {
    %c0_i32 = arith.constant 0 : i32
    %c0_i32_0 = arith.constant 0 : i32
    %c0_i32_1 = arith.constant 0 : i32
    return %c0_i32, %c0_i32_0 : i32, i32
  }
  func.func @transform_4(%arg0: i32, %arg1: i32, %arg2: i32) -> (i32, i32) {
    %c0_i32 = arith.constant 0 : i32
    %c0_i32_0 = arith.constant 0 : i32
    %c0_i32_1 = arith.constant 0 : i32
    return %c0_i32, %c0_i32_0 : i32, i32
  }
  func.func @transform_5(%arg0: i32, %arg1: i32, %arg2: i32) -> (i32, i32, i32) {
    %c0_i32 = arith.constant 0 : i32
    %c0_i32_0 = arith.constant 0 : i32
    return %arg0, %arg1, %c0_i32 : i32, i32, i32
  }
}

</mosaic_0001>

<llo_original>
// kernel: tpu_custom_call.1
$region0: #{tpu_custom_call.1}
  #allocation0 [shape = 'u32[]', space=smem, size = 0x4, offset = 0x4, fixed_abs, tag = 'smem constant byte address 0x4 - core index']
  #allocation1 [shape = 'u32[144,128]{1,0:T(1,128)}', space=vmem, size = 0x12000, scoped, tag = 'internal scratch']
  #allocation2 [shape = 'f32[8,1]{1,0:T(8,128)}', space=vmem, size = 0x1000, scoped, tag = 'scratch operand']
  #allocation3 [shape = 'f32[8,1]{1,0:T(8,128)}', space=vmem, size = 0x1000, scoped, tag = 'scratch operand']
  #allocation4 [shape = 'f32[8,16]{1,0:T(8,128)}', space=vmem, size = 0x1000, scoped, tag = 'scratch operand']
  %s0 = inlined_call_operand.hbm [shape: f32[2,8,16], index: 0, kind: input, shape index: {}]
  %s1 = inlined_call_operand.hbm [shape: f32[2,8,16], index: 1, kind: input, shape index: {}]
  %s2 = inlined_call_operand.hbm [shape: f32[2,8,16], index: 2, kind: input, shape index: {}]
  %s3 = inlined_call_operand.hbm [shape: f32[16,32], index: 3, kind: input, shape index: {}]
  %s4 = inlined_call_operand.vmem [shape: f32[1,32], index: 4, kind: input, shape index: {}]
  %s5 = inlined_call_operand.hbm [shape: f32[2,8,32], index: 5, kind: output, shape index: {}]
  %s6 = sld [smem:[#allocation0]]
  $region77: #{tpu_custom_call.1} parent=0
    _
  %s8 = ssub.s32 1, %s6
  %s9 = scalar_select 0, %s8, %s6
  $region1: #{tpu_custom_call.1} parent=0
    #allocation5 [shape = 'u8[8192]{0}', space=vmem, size = 0x2000, scoped, tag = 'input window, operand 0']
    #allocation6 [shape = 's32[2]{0}', space=sflag, size = 0x8, scoped, tag = 'scoped memory for tpu_custom_call.1']
    #allocation7 [shape = 's32[2]{0}', space=sflag, size = 0x8, scoped, tag = 'scoped memory for tpu_custom_call.1']
    #allocation8 [shape = 'u8[8192]{0}', space=vmem, size = 0x2000, scoped, tag = 'input window, operand 1']
    #allocation9 [shape = 's32[2]{0}', space=sflag, size = 0x8, scoped, tag = 'scoped memory for tpu_custom_call.1']
    #allocation10 [shape = 'u8[8192]{0}', space=vmem, size = 0x2000, scoped, tag = 'input window, operand 2']
    #allocation11 [shape = 'u8[8192]{0}', space=vmem, size = 0x2000, scoped, tag = 'input window, operand 3, single buffered']
    #allocation12 [shape = 's32[1]{0}', space=sflag, size = 0x4, scoped, tag = 'scoped memory for tpu_custom_call.1']
    #allocation13 [shape = 'u8[8192]{0}', space=vmem, size = 0x2000, scoped, tag = 'output window, operand 0']
    %10 = vsyncpa [#allocation6], 0
    %s11 = scalar_lea.sflag [#allocation6], 1
    %12 = vsyncpa %s11, 0
    %13 = vsyncpa [#allocation9], 0
    %s14 = scalar_lea.sflag [#allocation9], 1
    %15 = vsyncpa %s14, 0
    %16 = vsyncpa [#allocation12], 0
    %17 = vsyncpa [#allocation7], 0
    %s18 = scalar_lea.sflag [#allocation7], 1
    %19 = vsyncpa %s18, 0
    loop: start=0, step=1, limit=4
    $region2: #{tpu_custom_call.1} parent=1 // loop_pre_header
      _
    $region3: #{tpu_custom_call.1} parent=1 // loop_header
      %s21 = sphi 0, %s25
      %p22 = scmp.ge.s32.totalorder %s21, 4
      %s28 = sphi 0, %s47
      %s29 = sphi 0, %s43
      %s30 = sphi 0, %s39
      %s31 = sphi 0, %s28
      %s32 = sphi 0, %s29
      %s33 = sphi 0, %s30
      %s34 = sphi 0, %s31
      %s35 = sphi 0, %s32
      %s36 = sphi 0, %s33
      %s52 = sphi 0, %s54
      %s55 = sphi 0, %s52
      %s56 = sphi 0, %s55
      %s72 = sphi 0, %s56
      %s80 = sphi 0, %s82
      %s83 = sphi 0, %s80
      %s84 = sphi 0, %s83
      %s100 = sphi 0, %s84
      %s108 = sphi 0, %s110
      %s111 = sphi 0, %s108
      %s112 = sphi 0, %s111
      %s128 = sphi 0, %s112
      %s132 = sphi 0, %s132
      %s134 = sphi 0, %s132
      %s135 = sphi 0, %s134
      %s149 = sphi 0, %s135
      %s153 = sphi 0, %s153
      %s155 = sphi 0, %s153
      %s156 = sphi 0, %s155
      %s170 = sphi 0, %s156
      %s178 = sphi 0, %s180
      %s181 = sphi 0, %s178
      %s182 = sphi 0, %s181
      %s198 = sphi 0, %s182
    $region4: #{tpu_custom_call.1} parent=1 // loop_header_branch
      %24 = sbr.rel (%p22) target = $region8
    $region5: #{tpu_custom_call.1} parent=1 // loop_body
      %s26 = ssub.s32 %s21, 1
      %s27 = ssub.s32 %s21, 2
      %s37 = sadd.s32 1, %s30
      %p38 = scmp.ge.s32.totalorder %s37, 1
      %s39 = scalar_select %p38, 0, %s37
      %s40 = sadd.s32 1, %s29
      %s41 = scalar_select %p38, %s40, %s29
      %p42 = scmp.ge.s32.totalorder %s41, 1
      %s43 = scalar_select %p42, 0, %s41
      %s44 = sadd.s32 1, %s28
      %s45 = scalar_select %p42, %s44, %s28
      %p46 = scmp.ge.s32.totalorder %s45, 2
      %s47 = scalar_select %p46, 0, %s45
      %s48 = ssub.s32 %s28, %s47
      %s49 = ssub.s32 %s29, %s43
      %s50 = sor.u32 %s48, %s49
      %p51 = scmp.eq.s32.totalorder %s50, 0
      %s53 = sadd.s32 %s52, 1
      %s54 = scalar_select %p51, %s52, %s53
      %p57 = pneg %p51
      %p58 = scmp.eq.s32.totalorder %s21, 1
      %p59 = por %p57, %p58
      %p60 = scmp.ne.s32.totalorder %s52, %s55
      %p61 = scmp.eq.s32.totalorder %s21, 0
      %p62 = por %p60, %p61
      %p63 = scmp.ne.s32.totalorder %s52, %s55
      %p64 = scmp.eq.s32.totalorder %s26, 1
      %p65 = por %p63, %p64
      %p66 = scmp.ne.s32.totalorder %s55, %s56
      %p67 = scmp.eq.s32.totalorder %s26, 0
      %p68 = por %p66, %p67
      %p69 = scmp.ne.s32.totalorder %s55, %s56
      %p70 = scmp.eq.s32.totalorder %s27, 1
      %p71 = por %p69, %p70
      %p73 = scmp.ne.s32.totalorder %s56, %s72
      %p74 = scmp.eq.s32.totalorder %s27, 0
      %p75 = por %p73, %p74
      %s76 = ssub.s32 %s28, %s47
      %s77 = ssub.s32 %s30, %s39
      %s78 = sor.u32 %s76, %s77
      %p79 = scmp.eq.s32.totalorder %s78, 0
      %s81 = sadd.s32 %s80, 1
      %s82 = scalar_select %p79, %s80, %s81
      %p85 = pneg %p79
      %p86 = scmp.eq.s32.totalorder %s21, 1
      %p87 = por %p85, %p86
      %p88 = scmp.ne.s32.totalorder %s80, %s83
      %p89 = scmp.eq.s32.totalorder %s21, 0
      %p90 = por %p88, %p89
      %p91 = scmp.ne.s32.totalorder %s80, %s83
      %p92 = scmp.eq.s32.totalorder %s26, 1
      %p93 = por %p91, %p92
      %p94 = scmp.ne.s32.totalorder %s83, %s84
      %p95 = scmp.eq.s32.totalorder %s26, 0
      %p96 = por %p94, %p95
      %p97 = scmp.ne.s32.totalorder %s83, %s84
      %p98 = scmp.eq.s32.totalorder %s27, 1
      %p99 = por %p97, %p98
      %p101 = scmp.ne.s32.totalorder %s84, %s100
      %p102 = scmp.eq.s32.totalorder %s27, 0
      %p103 = por %p101, %p102
      %s104 = ssub.s32 %s28, %s47
      %s105 = ssub.s32 %s30, %s39
      %s106 = sor.u32 %s104, %s105
      %p107 = scmp.eq.s32.totalorder %s106, 0
      %s109 = sadd.s32 %s108, 1
      %s110 = scalar_select %p107, %s108, %s109
      %p113 = pneg %p107
      %p114 = scmp.eq.s32.totalorder %s21, 1
      %p115 = por %p113, %p114
      %p116 = scmp.ne.s32.totalorder %s108, %s111
      %p117 = scmp.eq.s32.totalorder %s21, 0
      %p118 = por %p116, %p117
      %p119 = scmp.ne.s32.totalorder %s108, %s111
      %p120 = scmp.eq.s32.totalorder %s26, 1
      %p121 = por %p119, %p120
      %p122 = scmp.ne.s32.totalorder %s111, %s112
      %p123 = scmp.eq.s32.totalorder %s26, 0
      %p124 = por %p122, %p123
      %p125 = scmp.ne.s32.totalorder %s111, %s112
      %p126 = scmp.eq.s32.totalorder %s27, 1
      %p127 = por %p125, %p126
      %p129 = scmp.ne.s32.totalorder %s112, %s128
      %p130 = scmp.eq.s32.totalorder %s27, 0
      %p131 = por %p129, %p130
      %s133 = sadd.s32 %s132, 1
      %p136 = scmp.eq.s32.totalorder %s21, 1
      %p137 = scmp.ne.s32.totalorder %s132, %s134
      %p138 = scmp.eq.s32.totalorder %s21, 0
      %p139 = por %p137, %p138
      %p140 = scmp.ne.s32.totalorder %s132, %s134
      %p141 = scmp.eq.s32.totalorder %s26, 1
      %p142 = por %p140, %p141
      %p143 = scmp.ne.s32.totalorder %s134, %s135
      %p144 = scmp.eq.s32.totalorder %s26, 0
      %p145 = por %p143, %p144
      %p146 = scmp.ne.s32.totalorder %s134, %s135
      %p147 = scmp.eq.s32.totalorder %s27, 1
      %p148 = por %p146, %p147
      %p150 = scmp.ne.s32.totalorder %s135, %s149
      %p151 = scmp.eq.s32.totalorder %s27, 0
      %p152 = por %p150, %p151
      %s154 = sadd.s32 %s153, 1
      %p157 = scmp.eq.s32.totalorder %s21, 1
      %p158 = scmp.ne.s32.totalorder %s153, %s155
      %p159 = scmp.eq.s32.totalorder %s21, 0
      %p160 = por %p158, %p159
      %p161 = scmp.ne.s32.totalorder %s153, %s155
      %p162 = scmp.eq.s32.totalorder %s26, 1
      %p163 = por %p161, %p162
      %p164 = scmp.ne.s32.totalorder %s155, %s156
      %p165 = scmp.eq.s32.totalorder %s26, 0
      %p166 = por %p164, %p165
      %p167 = scmp.ne.s32.totalorder %s155, %s156
      %p168 = scmp.eq.s32.totalorder %s27, 1
      %p169 = por %p167, %p168
      %p171 = scmp.ne.s32.totalorder %s156, %s170
      %p172 = scmp.eq.s32.totalorder %s27, 0
      %p173 = por %p171, %p172
      %s174 = ssub.s32 %s28, %s47
      %s175 = ssub.s32 %s29, %s43
      %s176 = sor.u32 %s174, %s175
      %p177 = scmp.eq.s32.totalorder %s176, 0
      %s179 = sadd.s32 %s178, 1
      %s180 = scalar_select %p177, %s178, %s179
      %p183 = pneg %p177
      %p184 = scmp.eq.s32.totalorder %s21, 1
      %p185 = por %p183, %p184
      %p186 = scmp.ne.s32.totalorder %s178, %s181
      %p187 = scmp.eq.s32.totalorder %s21, 0
      %p188 = por %p186, %p187
      %p189 = scmp.ne.s32.totalorder %s178, %s181
      %p190 = scmp.eq.s32.totalorder %s26, 1
      %p191 = por %p189, %p190
      %p192 = scmp.ne.s32.totalorder %s181, %s182
      %p193 = scmp.eq.s32.totalorder %s26, 0
      %p194 = por %p192, %p193
      %p195 = scmp.ne.s32.totalorder %s181, %s182
      %p196 = scmp.eq.s32.totalorder %s27, 1
      %p197 = por %p195, %p196
      %p199 = scmp.ne.s32.totalorder %s182, %s198
      %p200 = scmp.eq.s32.totalorder %s27, 0
      %p201 = por %p199, %p200
      %p202 = scmp.le.s32.totalorder 1, %s21
      %p203 = scmp.lt.s32.totalorder %s21, 3
      %p204 = pnand %p202, %p203
      %p205 = pneg %p204
      // Predicated region
      $region9: #{tpu_custom_call.1} parent=5 // pred_check
        _
      $region10: #{tpu_custom_call.1} parent=5 // pred_check_branch
        %207 = sbr.rel (%p204) target = $region12
      $region11: #{tpu_custom_call.1} parent=5 // pred_region
        %s208 = ssub.s32 %s21, 1
        // Predicated region
        $region13: #{tpu_custom_call.1} parent=11 // pred_check
          %p209 = pneg %p145
        $region14: #{tpu_custom_call.1} parent=11 // pred_check_branch
          %211 = sbr.rel (%p209) target = $region16
        $region15: #{tpu_custom_call.1} parent=11 // pred_region
          %s213 = ssub.s32 256, 256
          %214 = vsyncadd [#allocation12], %s213
          %s215 = sshll.u32 [#allocation11], 4
          %s216 = int_to_ptr.vmem [resolvable:$true] %s215
          %221 = dma.hbm_to_vmem [thread:$0]  %s3, 256, %s216, [#allocation12], 128, 128, 8
        $region16: #{tpu_custom_call.1} parent=11 // pred_fallthru
          _
        // Predicated region
        $region17: #{tpu_custom_call.1} parent=11 // pred_check
          %p222 = pneg %p166
        $region18: #{tpu_custom_call.1} parent=11 // pred_check_branch
          %224 = sbr.rel (%p222) target = $region20
        $region19: #{tpu_custom_call.1} parent=11 // pred_region
          _
        $region20: #{tpu_custom_call.1} parent=11 // pred_fallthru
          _
      $region12: #{tpu_custom_call.1} parent=5 // pred_fallthru
        _
      %p225 = scmp.lt.s32.totalorder %s21, 2
      // Predicated region
      $region21: #{tpu_custom_call.1} parent=5 // pred_check
        %p226 = pneg %p225
      $region22: #{tpu_custom_call.1} parent=5 // pred_check_branch
        %228 = sbr.rel (%p226) target = $region24
      $region23: #{tpu_custom_call.1} parent=5 // pred_region
        // Predicated region
        $region25: #{tpu_custom_call.1} parent=23 // pred_check
          %p229 = pneg %p62
        $region26: #{tpu_custom_call.1} parent=23 // pred_check_branch
          %231 = sbr.rel (%p229) target = $region28
        $region27: #{tpu_custom_call.1} parent=23 // pred_region
          %s232 = sand.u32 %s52, 1
          %s233 = scalar_lea.sflag [#allocation6], %s232
          %s234 = sand.u32 %s52, 1
          %s235 = smul.addr %s234, 8
          %s236 = scalar_lea.vmem [#allocation5], %s235
          %s238 = ssub.s32 128, 128
          %239 = vsyncadd %s233, %s238
          %s240 = sadd.s32 %s29, %s28
          %s241 = smul.addr %s240, 128
          %s242 = scalar_lea.hbm %s0, %s241
          %s244 = sshll.u32 %s236, 4
          %s245 = int_to_ptr.vmem [resolvable:$true] %s244
          %247 = dma.hbm_to_vmem [thread:$0]  %s242, 128, %s245, %s233
        $region28: #{tpu_custom_call.1} parent=23 // pred_fallthru
          _
        // Predicated region
        $region29: #{tpu_custom_call.1} parent=23 // pred_check
          %p248 = pneg %p90
        $region30: #{tpu_custom_call.1} parent=23 // pred_check_branch
          %250 = sbr.rel (%p248) target = $region32
        $region31: #{tpu_custom_call.1} parent=23 // pred_region
          %s251 = sand.u32 %s21, 1
          %s252 = scalar_lea.sflag [#allocation9], %s251
          %s253 = sand.u32 %s80, 1
          %s254 = smul.addr %s253, 8
          %s255 = scalar_lea.vmem [#allocation8], %s254
          %s257 = ssub.s32 128, 128
          %258 = vsyncadd %s252, %s257
          %s259 = sadd.s32 %s30, %s28
          %s260 = smul.addr %s259, 128
          %s261 = scalar_lea.hbm %s1, %s260
          %s263 = sshll.u32 %s255, 4
          %s264 = int_to_ptr.vmem [resolvable:$true] %s263
          %266 = dma.hbm_to_vmem [thread:$0]  %s261, 128, %s264, %s252
        $region32: #{tpu_custom_call.1} parent=23 // pred_fallthru
          _
        // Predicated region
        $region33: #{tpu_custom_call.1} parent=23 // pred_check
          %p267 = pneg %p118
        $region34: #{tpu_custom_call.1} parent=23 // pred_check_branch
          %269 = sbr.rel (%p267) target = $region36
        $region35: #{tpu_custom_call.1} parent=23 // pred_region
          %s270 = sand.u32 %s21, 1
          %s271 = scalar_lea.sflag [#allocation9], %s270
          %s272 = sand.u32 %s108, 1
          %s273 = smul.addr %s272, 8
          %s274 = scalar_lea.vmem [#allocation10], %s273
          %s276 = ssub.s32 128, 128
          %277 = vsyncadd %s271, %s276
          %s278 = sadd.s32 %s30, %s28
          %s279 = smul.addr %s278, 128
          %s280 = scalar_lea.hbm %s2, %s279
          %s282 = sshll.u32 %s274, 4
          %s283 = int_to_ptr.vmem [resolvable:$true] %s282
          %285 = dma.hbm_to_vmem [thread:$0]  %s280, 128, %s283, %s271
        $region36: #{tpu_custom_call.1} parent=23 // pred_fallthru
          _
      $region24: #{tpu_custom_call.1} parent=5 // pred_fallthru
        _
      %p286 = scmp.le.s32.totalorder 1, %s21
      %p287 = scmp.lt.s32.totalorder %s21, 3
      %p288 = pnand %p286, %p287
      %p289 = pneg %p288
      // Predicated region
      $region37: #{tpu_custom_call.1} parent=5 // pred_check
        _
      $region38: #{tpu_custom_call.1} parent=5 // pred_check_branch
        %291 = sbr.rel (%p288) target = $region40
      $region39: #{tpu_custom_call.1} parent=5 // pred_region
        %s292 = ssub.s32 %s21, 1
        %s293 = sand.u32 %s55, 1
        %s294 = scalar_lea.sflag [#allocation6], %s293
        %s295 = sand.u32 %s55, 1
        %s296 = smul.addr %s295, 8
        %s297 = scalar_lea.vmem [#allocation5], %s296
        // Predicated region
        $region41: #{tpu_custom_call.1} parent=39 // pred_check
          %p298 = pneg %p68
        $region42: #{tpu_custom_call.1} parent=39 // pred_check_branch
          %300 = sbr.rel (%p298) target = $region44
        $region43: #{tpu_custom_call.1} parent=39 // pred_region
          %301 = dma.done %s294, 128
        $region44: #{tpu_custom_call.1} parent=39 // pred_fallthru
          _
        %s302 = sand.u32 %s26, 1
        %s303 = scalar_lea.sflag [#allocation9], %s302
        %s304 = sand.u32 %s83, 1
        %s305 = smul.addr %s304, 8
        %s306 = scalar_lea.vmem [#allocation8], %s305
        // Predicated region
        $region45: #{tpu_custom_call.1} parent=39 // pred_check
          %p307 = pneg %p96
        $region46: #{tpu_custom_call.1} parent=39 // pred_check_branch
          %309 = sbr.rel (%p307) target = $region48
        $region47: #{tpu_custom_call.1} parent=39 // pred_region
          %310 = dma.done %s303, 128
        $region48: #{tpu_custom_call.1} parent=39 // pred_fallthru
          _
        %s311 = sand.u32 %s26, 1
        %s312 = scalar_lea.sflag [#allocation9], %s311
        %s313 = sand.u32 %s111, 1
        %s314 = smul.addr %s313, 8
        %s315 = scalar_lea.vmem [#allocation10], %s314
        // Predicated region
        $region49: #{tpu_custom_call.1} parent=39 // pred_check
          %p316 = pneg %p124
        $region50: #{tpu_custom_call.1} parent=39 // pred_check_branch
          %318 = sbr.rel (%p316) target = $region52
        $region51: #{tpu_custom_call.1} parent=39 // pred_region
          %319 = dma.done %s312, 128
        $region52: #{tpu_custom_call.1} parent=39 // pred_fallthru
          _
        // Predicated region
        $region53: #{tpu_custom_call.1} parent=39 // pred_check
          %p320 = pneg %p145
        $region54: #{tpu_custom_call.1} parent=39 // pred_check_branch
          %322 = sbr.rel (%p320) target = $region56
        $region55: #{tpu_custom_call.1} parent=39 // pred_region
          %323 = dma.done [#allocation12], 256
        $region56: #{tpu_custom_call.1} parent=39 // pred_fallthru
          _
        %s324 = sand.u32 %s55, 1
        %s325 = scalar_lea.sflag [#allocation6], %s324
        %s326 = sand.u32 %s55, 1
        %s327 = smul.addr %s326, 8
        %s328 = scalar_lea.vmem [#allocation5], %s327
        %p329 = pneg %p68
        %p330 = pneg %p65
        %s331 = sand.u32 %s26, 1
        %s332 = scalar_lea.sflag [#allocation9], %s331
        %s333 = sand.u32 %s83, 1
        %s334 = smul.addr %s333, 8
        %s335 = scalar_lea.vmem [#allocation8], %s334
        %p336 = pneg %p96
        %p337 = pneg %p93
        %s338 = sand.u32 %s26, 1
        %s339 = scalar_lea.sflag [#allocation9], %s338
        %s340 = sand.u32 %s111, 1
        %s341 = smul.addr %s340, 8
        %s342 = scalar_lea.vmem [#allocation10], %s341
        %p343 = pneg %p124
        %p344 = pneg %p121
        %p345 = pneg %p145
        %p346 = pneg %p142
        %p347 = pneg %p166
        %p348 = pneg %p163
        %p349 = pneg %p194
        %p350 = pneg %p191
        %s351 = sand.u32 %s181, 1
        %s352 = scalar_lea.sflag [#allocation7], %s351
        %s353 = sand.u32 %s181, 1
        %s354 = smul.addr %s353, 8
        %s355 = scalar_lea.vmem [#allocation13], %s354
        %p356 = scmp.eq.s32.totalorder %s33, 0
        // Predicated region
        $region57: #{tpu_custom_call.1} parent=39 // pred_check
          %p357 = pneg %p356
        $region58: #{tpu_custom_call.1} parent=39 // pred_check_branch
          %359 = sbr.rel (%p357) target = $region60
        $region59: #{tpu_custom_call.1} parent=39 // pred_region
          %vm360 = vcmask 7168
          %361 = vst.msk [vmem:[#allocation2] sm:$0xff] %vm360, -1e+30
          %362 = vst.msk [vmem:[#allocation3] sm:$0xff] %vm360, 0.0
          %vm363 = vcmask 130048
          %364 = vst.msk [vmem:[#allocation4] sm:$0xff] %vm363, 0.0
        $region60: #{tpu_custom_call.1} parent=39 // pred_fallthru
          _
        %v365 = vld [vmem:[%s297] sm:$0xff]
        %v366 = vmul.f32 %v365, 0.25
        %v367 = vld [vmem:[%s306] sm:$0xff]
        %vm368 = vcmask 130048
        %v370 = vsel %vm368, %v366, 0
        %v373 = vsel %vm368, %v367, 0
        %375 = vmatprep.subr.mxu0 0.0
        %376 = vmatpush1.xpose.msra.mxu0 0.0
        %377 = vmatprep.subr.mxu0 0.0
        %378 = vmatpush1.xpose.msra.mxu0 0.0
        %379 = vmatprep.subr.mxu0 0.0
        %380 = vmatpush1.xpose.msra.mxu0 0.0
        %381 = vmatprep.subr.mxu0 0.0
        %382 = vmatpush1.xpose.msra.mxu0 0.0
        %383 = vmatprep.subr.mxu0 0.0
        %384 = vmatpush1.xpose.msra.mxu0 0.0
        %385 = vmatprep.subr.mxu0 0.0
        %386 = vmatpush1.xpose.msra.mxu0 0.0
        %387 = vmatprep.subr.mxu0 0.0
        %388 = vmatpush1.xpose.msra.mxu0 0.0
        %389 = vmatprep.subr.mxu0 0.0
        %390 = vmatpush1.xpose.msra.mxu0 0.0
        %391 = vmatprep.subr.mxu0 0.0
        %392 = vmatpush1.xpose.msra.mxu0 0.0
        %393 = vmatprep.subr.mxu0 0.0
        %394 = vmatpush1.xpose.msra.mxu0 0.0
        %395 = vmatprep.subr.mxu0 0.0
        %396 = vmatpush1.xpose.msra.mxu0 0.0
        %397 = vmatprep.subr.mxu0 0.0
        %398 = vmatpush1.xpose.msra.mxu0 0.0
        %399 = vmatprep.subr.mxu0 0.0
        %400 = vmatpush1.xpose.msra.mxu0 0.0
        %401 = vmatprep.subr.mxu0 0.0
        %402 = vmatpush1.xpose.msra.mxu0 0.0
        %403 = vmatprep.subr.mxu0 0.0
        %404 = vmatpush1.xpose.msra.mxu0 0.0
        %405 = vmatprep.subr.mxu0 0.0
        %406 = vmatpush1.xpose.msra.mxu0 %v373
        %407 = vmatprep.subr.mxu0 0.0
        %408 = vmatpush2.xpose.msra.mxu0 0.0
        %409 = vmatprep.subr.mxu0 0.0
        %410 = vmatpush2.xpose.msra.mxu0 0.0
        %411 = vmatprep.subr.mxu0 0.0
        %412 = vmatpush2.xpose.msra.mxu0 0.0
        %413 = vmatprep.subr.mxu0 0.0
        %414 = vmatpush2.xpose.msra.mxu0 0.0
        %415 = vmatprep.subr.mxu0 0.0
        %416 = vmatpush2.xpose.msra.mxu0 0.0
        %417 = vmatprep.subr.mxu0 0.0
        %418 = vmatpush2.xpose.msra.mxu0 0.0
        %419 = vmatprep.subr.mxu0 0.0
        %420 = vmatpush2.xpose.msra.mxu0 0.0
        %421 = vmatprep.subr.mxu0 0.0
        %422 = vmatpush2.xpose.msra.mxu0 0.0
        %423 = vmatprep.subr.mxu0 0.0
        %424 = vmatpush2.xpose.msra.mxu0 0.0
        %425 = vmatprep.subr.mxu0 0.0
        %426 = vmatpush2.xpose.msra.mxu0 0.0
        %427 = vmatprep.subr.mxu0 0.0
        %428 = vmatpush2.xpose.msra.mxu0 0.0
        %429 = vmatprep.subr.mxu0 0.0
        %430 = vmatpush2.xpose.msra.mxu0 0.0
        %431 = vmatprep.subr.mxu0 0.0
        %432 = vmatpush2.xpose.msra.mxu0 0.0
        %433 = vmatprep.subr.mxu0 0.0
        %434 = vmatpush2.xpose.msra.mxu0 0.0
        %435 = vmatprep.subr.mxu0 0.0
        %436 = vmatpush2.xpose.msra.mxu0 0.0
        %437 = vmatprep.subr.mxu0 0.0
        %438 = vmatpush2.xpose.msra.mxu0 0.0
        %439 = vmatprep.mubr.f32.mxu0 0.0
        %440 = vmatmul.mubr.f32.gmra.mxu0 %v370
        %v441 = vpop.f32.mrf.mxu0
        %v442 = vadd.f32 0.0, %v441
        %v443 = vpop.f32.mrf.mxu0
        %444 = vdwg.mxu0
        %v445 = vld [vmem:[#allocation2] sm:$0xff]
        %vm446 = vcmask 64512
        %v447 = vsel %vm446, %v442, -inf
        %448 = vmax.xlane.f32.xlu0 %v447
        %v449 = vpop.xlane.xlu0 %448
        %v450 = vmax.f32 %v445, %v449
        %v451 = vsub.f32 %v445, %v450
        %v452 = vmul.f32 %v451, 1.442695
        %v453 = vpow.pop %v452
        %455 = vset.pattern.permute.xlu0 0
        %456 = vperm.xlu0 %455, %v450
        %v457 = vpop.permute.xlu0 %456
        %v459 = vsub.f32 %v442, %v457
        %v460 = vmul.f32 %v459, 1.442695
        %v461 = vpow.pop %v460
        %v462 = vld [vmem:[#allocation3] sm:$0xff]
        %v463 = vmul.f32 %v453, %v462
        %v464 = vsel %vm446, %v461, 0.0
        %465 = vadd.xlane.f32.xlu0 %v464
        %v466 = vpop.xlane.xlu0 %465
        %v467 = vadd.f32 %v463, %v466
        %vm468 = vcmask 7168
        %469 = vst.msk [vmem:[#allocation3] sm:$0xff] %vm468, %v467
        %v470 = vld [vmem:[#allocation4] sm:$0xff]
        %472 = vset.pattern.permute.xlu0 0
        %473 = vperm.xlu0 %472, %v453
        %v474 = vpop.permute.xlu0 %473
        %v476 = vmul.f32 %v474, %v470
        %v477 = vld [vmem:[%s315] sm:$0xff]
        %v479 = vsel %vm446, %v461, 0
        %481 = vmatprep.subr.mxu0 0.0
        %482 = vmatpush1.msra.mxu0 0.0
        %483 = vmatprep.subr.mxu0 0.0
        %484 = vmatpush1.msra.mxu0 0.0
        %485 = vmatprep.subr.mxu0 0.0
        %486 = vmatpush1.msra.mxu0 0.0
        %487 = vmatprep.subr.mxu0 0.0
        %488 = vmatpush1.msra.mxu0 0.0
        %489 = vmatprep.subr.mxu0 0.0
        %490 = vmatpush1.msra.mxu0 0.0
        %491 = vmatprep.subr.mxu0 0.0
        %492 = vmatpush1.msra.mxu0 0.0
        %493 = vmatprep.subr.mxu0 0.0
        %494 = vmatpush1.msra.mxu0 0.0
        %495 = vmatprep.subr.mxu0 0.0
        %496 = vmatpush1.msra.mxu0 0.0
        %497 = vmatprep.subr.mxu0 0.0
        %498 = vmatpush1.msra.mxu0 0.0
        %499 = vmatprep.subr.mxu0 0.0
        %500 = vmatpush1.msra.mxu0 0.0
        %501 = vmatprep.subr.mxu0 0.0
        %502 = vmatpush1.msra.mxu0 0.0
        %503 = vmatprep.subr.mxu0 0.0
        %504 = vmatpush1.msra.mxu0 0.0
        %505 = vmatprep.subr.mxu0 0.0
        %506 = vmatpush1.msra.mxu0 0.0
        %507 = vmatprep.subr.mxu0 0.0
        %508 = vmatpush1.msra.mxu0 0.0
        %509 = vmatprep.subr.mxu0 0.0
        %510 = vmatpush1.msra.mxu0 0.0
        %511 = vmatprep.subr.mxu0 0.0
        %512 = vmatpush1.msra.mxu0 %v477
        %513 = vmatprep.subr.mxu0 0.0
        %514 = vmatpush2.msra.mxu0 0.0
        %515 = vmatprep.subr.mxu0 0.0
        %516 = vmatpush2.msra.mxu0 0.0
        %517 = vmatprep.subr.mxu0 0.0
        %518 = vmatpush2.msra.mxu0 0.0
        %519 = vmatprep.subr.mxu0 0.0
        %520 = vmatpush2.msra.mxu0 0.0
        %521 = vmatprep.subr.mxu0 0.0
        %522 = vmatpush2.msra.mxu0 0.0
        %523 = vmatprep.subr.mxu0 0.0
        %524 = vmatpush2.msra.mxu0 0.0
        %525 = vmatprep.subr.mxu0 0.0
        %526 = vmatpush2.msra.mxu0 0.0
        %527 = vmatprep.subr.mxu0 0.0
        %528 = vmatpush2.msra.mxu0 0.0
        %529 = vmatprep.subr.mxu0 0.0
        %530 = vmatpush2.msra.mxu0 0.0
        %531 = vmatprep.subr.mxu0 0.0
        %532 = vmatpush2.msra.mxu0 0.0
        %533 = vmatprep.subr.mxu0 0.0
        %534 = vmatpush2.msra.mxu0 0.0
        %535 = vmatprep.subr.mxu0 0.0
        %536 = vmatpush2.msra.mxu0 0.0
        %537 = vmatprep.subr.mxu0 0.0
        %538 = vmatpush2.msra.mxu0 0.0
        %539 = vmatprep.subr.mxu0 0.0
        %540 = vmatpush2.msra.mxu0 0.0
        %541 = vmatprep.subr.mxu0 0.0
        %542 = vmatpush2.msra.mxu0 0.0
        %543 = vmatprep.subr.mxu0 0.0
        %544 = vmatpush2.msra.mxu0 0.0
        %545 = vmatprep.mubr.f32.mxu0 0.0
        %546 = vmatmul.mubr.f32.gmra.mxu0 %v479
        %v547 = vpop.f32.mrf.mxu0
        %v548 = vadd.f32 0.0, %v547
        %v549 = vpop.f32.mrf.mxu0
        %550 = vdwg.mxu0
        %v551 = vadd.f32 %v476, %v548
        %552 = vst.msk [vmem:[#allocation4] sm:$0xff] %vm368, %v551
        %553 = vst.msk [vmem:[#allocation2] sm:$0xff] %vm468, %v450
        // Predicated region
        $region61: #{tpu_custom_call.1} parent=39 // pred_check
          %p554 = pneg %p356
        $region62: #{tpu_custom_call.1} parent=39 // pred_check_branch
          %556 = sbr.rel (%p554) target = $region64
        $region63: #{tpu_custom_call.1} parent=39 // pred_region
          %v557 = vld [vmem:[#allocation3] sm:$0xff]
          %v558 = vrcp.pop %v557
          %v559 = vld [vmem:[#allocation4] sm:$0xff]
          %561 = vset.pattern.permute.xlu0 0
          %562 = vperm.xlu0 %561, %v558
          %v563 = vpop.permute.xlu0 %562
          %v565 = vmul.f32 %v559, %v563
          %v566 = vld [vmem:[#allocation11] sm:$0xff]
          %v567 = vld [vmem:[#allocation11 + $0x8] sm:$0xff]
          %v568 = vld [vmem:[%s4] sm:$0x1]
          %v570 = vlaneseq
          %v571 = vshrl.u32 %v570, 7
          %v572 = vsub.s32 0, %v571
          %v573 = vrot.slane %v568, %v572
          %v576 = vsel %vm368, %v565, 0
          %578 = vmatprep.subr.mxu0 0.0
          %579 = vmatpush1.msra.mxu0 0.0
          %580 = vmatprep.subr.mxu0 0.0
          %581 = vmatpush1.msra.mxu0 0.0
          %582 = vmatprep.subr.mxu0 0.0
          %583 = vmatpush1.msra.mxu0 0.0
          %584 = vmatprep.subr.mxu0 0.0
          %585 = vmatpush1.msra.mxu0 0.0
          %586 = vmatprep.subr.mxu0 0.0
          %587 = vmatpush1.msra.mxu0 0.0
          %588 = vmatprep.subr.mxu0 0.0
          %589 = vmatpush1.msra.mxu0 0.0
          %590 = vmatprep.subr.mxu0 0.0
          %591 = vmatpush1.msra.mxu0 0.0
          %592 = vmatprep.subr.mxu0 0.0
          %593 = vmatpush1.msra.mxu0 0.0
          %594 = vmatprep.subr.mxu0 0.0
          %595 = vmatpush1.msra.mxu0 0.0
          %596 = vmatprep.subr.mxu0 0.0
          %597 = vmatpush1.msra.mxu0 0.0
          %598 = vmatprep.subr.mxu0 0.0
          %599 = vmatpush1.msra.mxu0 0.0
          %600 = vmatprep.subr.mxu0 0.0
          %601 = vmatpush1.msra.mxu0 0.0
          %602 = vmatprep.subr.mxu0 0.0
          %603 = vmatpush1.msra.mxu0 0.0
          %604 = vmatprep.subr.mxu0 0.0
          %605 = vmatpush1.msra.mxu0 0.0
          %606 = vmatprep.subr.mxu0 0.0
          %607 = vmatpush1.msra.mxu0 %v567
          %608 = vmatprep.subr.mxu0 0.0
          %609 = vmatpush1.msra.mxu0 %v566
          %610 = vmatprep.subr.mxu0 0.0
          %611 = vmatpush2.msra.mxu0 0.0
          %612 = vmatprep.subr.mxu0 0.0
          %613 = vmatpush2.msra.mxu0 0.0
          %614 = vmatprep.subr.mxu0 0.0
          %615 = vmatpush2.msra.mxu0 0.0
          %616 = vmatprep.subr.mxu0 0.0
          %617 = vmatpush2.msra.mxu0 0.0
          %618 = vmatprep.subr.mxu0 0.0
          %619 = vmatpush2.msra.mxu0 0.0
          %620 = vmatprep.subr.mxu0 0.0
          %621 = vmatpush2.msra.mxu0 0.0
          %622 = vmatprep.subr.mxu0 0.0
          %623 = vmatpush2.msra.mxu0 0.0
          %624 = vmatprep.subr.mxu0 0.0
          %625 = vmatpush2.msra.mxu0 0.0
          %626 = vmatprep.subr.mxu0 0.0
          %627 = vmatpush2.msra.mxu0 0.0
          %628 = vmatprep.subr.mxu0 0.0
          %629 = vmatpush2.msra.mxu0 0.0
          %630 = vmatprep.subr.mxu0 0.0
          %631 = vmatpush2.msra.mxu0 0.0
          %632 = vmatprep.subr.mxu0 0.0
          %633 = vmatpush2.msra.mxu0 0.0
          %634 = vmatprep.subr.mxu0 0.0
          %635 = vmatpush2.msra.mxu0 0.0
          %636 = vmatprep.subr.mxu0 0.0
          %637 = vmatpush2.msra.mxu0 0.0
          %638 = vmatprep.subr.mxu0 0.0
          %639 = vmatpush2.msra.mxu0 0.0
          %640 = vmatprep.subr.mxu0 0.0
          %641 = vmatpush2.msra.mxu0 0.0
          %642 = vmatprep.mubr.f32.mxu0 0.0
          %643 = vmatmul.mubr.f32.gmra.mxu0 %v576
          %v644 = vpop.f32.mrf.mxu0
          %v645 = vadd.f32 %v573, %v644
          %v646 = vpop.f32.mrf.mxu0
          %647 = vdwg.mxu0
          %vm648 = vcmask 261120
          %649 = vst.msk [vmem:[%s355] sm:$0xff] %vm648, %v645
        $region64: #{tpu_custom_call.1} parent=39 // pred_fallthru
          _
        %s650 = sand.u32 %s181, 1
        %s651 = scalar_lea.sflag [#allocation7], %s650
        %s652 = sand.u32 %s181, 1
        %s653 = smul.addr %s652, 8
        %s654 = scalar_lea.vmem [#allocation13], %s653
        // Predicated region
        $region65: #{tpu_custom_call.1} parent=39 // pred_check
          %p655 = pneg %p191
        $region66: #{tpu_custom_call.1} parent=39 // pred_check_branch
          %657 = sbr.rel (%p655) target = $region68
        $region67: #{tpu_custom_call.1} parent=39 // pred_region
          %s659 = ssub.s32 128, 128
          %660 = vsyncadd %s651, %s659
          %s661 = sadd.s32 %s32, %s31
          %s662 = smul.addr %s661, 128
          %s663 = scalar_lea.hbm %s5, %s662
          %s665 = sshll.u32 %s654, 4
          %s666 = int_to_ptr.vmem [resolvable:$true] %s665
          %668 = dma.vmem_to_hbm [thread:$0]  %s666, 128, %s663, %s651
        $region68: #{tpu_custom_call.1} parent=39 // pred_fallthru
          _
      $region40: #{tpu_custom_call.1} parent=5 // pred_fallthru
        _
      %p669 = scmp.le.s32.totalorder 2, %s21
      // Predicated region
      $region69: #{tpu_custom_call.1} parent=5 // pred_check
        %p670 = pneg %p669
      $region70: #{tpu_custom_call.1} parent=5 // pred_check_branch
        %672 = sbr.rel (%p670) target = $region72
      $region71: #{tpu_custom_call.1} parent=5 // pred_region
        %s673 = ssub.s32 %s21, 2
        // Predicated region
        $region73: #{tpu_custom_call.1} parent=71 // pred_check
          %p674 = pneg %p197
        $region74: #{tpu_custom_call.1} parent=71 // pred_check_branch
          %676 = sbr.rel (%p674) target = $region76
        $region75: #{tpu_custom_call.1} parent=71 // pred_region
          %s677 = sand.u32 %s182, 1
          %s678 = scalar_lea.sflag [#allocation7], %s677
          %s679 = sand.u32 %s182, 1
          %s680 = smul.addr %s679, 8
          %s681 = scalar_lea.vmem [#allocation13], %s680
          %682 = dma.done %s678, 128
        $region76: #{tpu_custom_call.1} parent=71 // pred_fallthru
          _
      $region72: #{tpu_custom_call.1} parent=5 // pred_fallthru
        _
    $region6: #{tpu_custom_call.1} parent=1 // loop_footer
      %s25 = sadd.s32 1, %s21
    $region7: #{tpu_custom_call.1} parent=1 // loop_footer_branch
      %20 = sbr.rel target = $region3
    $region8: #{tpu_custom_call.1} parent=1 // loop_exit
      _
    %683 = vsyncpa [#allocation6], 1
    %s684 = scalar_lea.sflag [#allocation6], 1
    %685 = vsyncpa %s684, 1
    %686 = vsyncpa [#allocation9], 1
    %s687 = scalar_lea.sflag [#allocation9], 1
    %688 = vsyncpa %s687, 1
    %689 = vsyncpa [#allocation12], 1
    %690 = vsyncpa [#allocation7], 1
    %s691 = scalar_lea.sflag [#allocation7], 1
    %692 = vsyncpa %s691, 1

</llo_original>
